<compile_context>
chip_gen: v7x
topology: tpu7x:2x2x1
jax: 0.10.0
libtpu: 0.0.40
codegen_flags: <defaults>
</compile_context>

<pallas_src>
import functools

import jax
import jax.numpy as jnp
from jax.experimental import pallas as pl
from jax.experimental.pallas import tpu as pltpu

LANES = 128
SUBLANES = 8
MAX_BLOCK_ROWS = 2048  # 2048 x 128 f32 tile = 1 MiB per input per buffer


def _mse_partial_kernel(u_ref, v_ref, o_ref, *, valid_rows, need_mask):
    # Cast in-kernel so sub-f32 inputs (bf16/fp8) stream at native width.
    d = u_ref[...].astype(jnp.float32) - v_ref[...].astype(jnp.float32)
    sq = d * d
    if need_mask:
        # The last block extends past the array; those rows hold garbage.
        i = pl.program_id(0)
        row0 = i * u_ref.shape[0]
        rid = jax.lax.broadcasted_iota(jnp.int32, sq.shape, 0) + row0
        sq = jnp.where(rid < valid_rows, sq, 0.0)
    # Per-lane partial sums only (VPU adds); the single cross-lane reduce
    # happens once in the wrapper.
    o_ref[0] = jnp.sum(sq, axis=0, keepdims=True)


def mse_loss(U, V):
    """U, V: NCHW arrays of identical shape. Returns a scalar f32."""
    assert U.shape == V.shape
    N, C, H, W = U.shape
    total = N * C * H * W
    denom = float(total)  # == (N*C) * nxny

    u = U.reshape(-1)
    v = V.reshape(-1)

    # Round the flat length up to a whole (8,128) tile. This only copies when
    # `total` is not already a multiple of 1024; zero padding adds 0 to the
    # sum of squared differences.
    chunk = SUBLANES * LANES
    padded = pl.cdiv(total, chunk) * chunk
    if padded != total:
        u = jnp.pad(u, (0, padded - total))
        v = jnp.pad(v, (0, padded - total))

    rows = padded // LANES                       # multiple of 8
    block_rows = min(MAX_BLOCK_ROWS, rows)       # multiple of 8, <= rows
    num_blocks = pl.cdiv(rows, block_rows)
    need_mask = (rows % block_rows) != 0         # last block is partial

    u2 = u.reshape(rows, LANES)
    v2 = v.reshape(rows, LANES)

    kernel = functools.partial(
        _mse_partial_kernel, valid_rows=rows, need_mask=need_mask)

    partials = pl.pallas_call(
        kernel,
        out_shape=jax.ShapeDtypeStruct((num_blocks, 1, LANES), jnp.float32),
        grid_spec=pltpu.PrefetchScalarGridSpec(
            num_scalar_prefetch=0,
            grid=(num_blocks,),
            in_specs=[
                pl.BlockSpec((block_rows, LANES), lambda i: (i, 0)),
                pl.BlockSpec((block_rows, LANES), lambda i: (i, 0)),
            ],
            out_specs=pl.BlockSpec((1, 1, LANES), lambda i: (i, 0, 0)),
        ),
        compiler_params=pltpu.CompilerParams(
            dimension_semantics=("parallel",)),
    )(u2, v2)

    return jnp.sum(partials) / jnp.float32(denom)


if __name__ == "__main__":
    key = jax.random.PRNGKey(0)
    k1, k2 = jax.random.split(key)
    N, C, H, W = 2, 4, 16, 16
    U = jax.random.normal(k1, (N, C, H, W), dtype=jnp.float32)
    V = jax.random.normal(k2, (N, C, H, W), dtype=jnp.float32)

    loss = jax.block_until_ready(mse_loss(U, V))

    # Reference check (plain JAX) mirroring the torch formula.
    ref = jnp.mean(jnp.sum((U - V) ** 2, axis=(2, 3)) / (H * W))
    assert jnp.allclose(loss, ref, rtol=1e-6, atol=1e-6), (loss, ref)

    print("KERNEL_OK")
</pallas_src>

<mosaic_0001>
module attributes {stable_mosaic.version = 11 : i64} {
  func.func @_mse_partial_kernel(%arg0: i32, %arg1: memref<16x128xf32, #tpu.memory_space<vmem>>, %arg2: memref<16x128xf32, #tpu.memory_space<vmem>>, %arg3: memref<1x1x128xf32, #tpu.memory_space<vmem>>) attributes {dimension_semantics = [#tpu.dimension_semantics<parallel>], iteration_bounds = array<i64: 1>, scalar_prefetch = 0 : i64, scratch_operands = 0 : i64, tpu.core_type = #tpu.core_type<tc>, window_params = [{transform_indices = @transform_0, window_bounds = array<i64: 16, 128>}, {transform_indices = @transform_1, window_bounds = array<i64: 16, 128>}, {transform_indices = @transform_2, window_bounds = array<i64: 1, 1, 128>}]} {
    %c0 = arith.constant 0 : index
    %c0_0 = arith.constant 0 : index
    %0 = vector.load %arg1[%c0, %c0_0] : memref<16x128xf32, #tpu.memory_space<vmem>>, vector<16x128xf32>
    %c0_1 = arith.constant 0 : index
    %c0_2 = arith.constant 0 : index
    %1 = vector.load %arg2[%c0_1, %c0_2] : memref<16x128xf32, #tpu.memory_space<vmem>>, vector<16x128xf32>
    %2 = arith.subf %0, %1 : vector<16x128xf32>
    %3 = arith.mulf %2, %2 : vector<16x128xf32>
    %cst = arith.constant dense<0.000000e+00> : vector<128xf32>
    %4 = vector.multi_reduction <add>, %3, %cst [0] : vector<16x128xf32> to vector<128xf32>
    %5 = vector.shape_cast %4 : vector<128xf32> to vector<1x128xf32>
    %c0_3 = arith.constant 0 : index
    %c0_4 = arith.constant 0 : index
    %c0_5 = arith.constant 0 : index
    %6 = vector.load %arg3[%c0_3, %c0_4, %c0_5] : memref<1x1x128xf32, #tpu.memory_space<vmem>>, vector<1x1x128xf32>
    %7 = vector.shape_cast %6 : vector<1x1x128xf32> to vector<1x128xf32>
    %8 = vector.shape_cast %5 : vector<1x128xf32> to vector<1x1x128xf32>
    tpu.vector_store %arg3[%c0_3, %c0_4, %c0_5], %8 {strides = array<i32>} : memref<1x1x128xf32, #tpu.memory_space<vmem>>, vector<1x1x128xf32>,
    return
  }
  func.func @transform_0(%arg0: i32) -> (i32, i32) {
    %c0_i32 = arith.constant 0 : i32
    %c0_i32_0 = arith.constant 0 : i32
    return %arg0, %c0_i32 : i32, i32
  }
  func.func @transform_1(%arg0: i32) -> (i32, i32) {
    %c0_i32 = arith.constant 0 : i32
    %c0_i32_0 = arith.constant 0 : i32
    return %arg0, %c0_i32 : i32, i32
  }
  func.func @transform_2(%arg0: i32) -> (i32, i32, i32) {
    %c0_i32 = arith.constant 0 : i32
    %c0_i32_0 = arith.constant 0 : i32
    %c0_i32_1 = arith.constant 0 : i32
    return %arg0, %c0_i32, %c0_i32_0 : i32, i32, i32
  }
}

</mosaic_0001>

<llo_original>
// kernel: tpu_custom_call.1
$region0: #{tpu_custom_call.1}
  #allocation0 [shape = 'u32[]', space=smem, size = 0x4, offset = 0x4, fixed_abs, tag = 'smem constant byte address 0x4 - core index']
  #allocation1 [shape = 'u32[144,128]{1,0:T(1,128)}', space=vmem, size = 0x12000, scoped, tag = 'internal scratch']
  %s0 = inlined_call_operand.hbm [shape: f32[16,128], index: 0, kind: input, shape index: {}]
  %s1 = inlined_call_operand.hbm [shape: f32[16,128], index: 1, kind: input, shape index: {}]
  %s2 = inlined_call_operand.hbm [shape: f32[1,1,128], index: 2, kind: output, shape index: {}]
  %s3 = sld [smem:[#allocation0]]
  $region26: #{tpu_custom_call.1} parent=0
    _
  %s5 = ssub.s32 1, %s3
  %s6 = scalar_select 0, %s5, %s3
  $region1: #{tpu_custom_call.1} parent=0
    #allocation2 [shape = 'u8[8192]{0}', space=vmem, size = 0x2000, scoped, tag = 'input window, operand 0, single buffered']
    #allocation3 [shape = 's32[1]{0}', space=sflag, size = 0x4, scoped, tag = 'scoped memory for tpu_custom_call.1']
    #allocation4 [shape = 's32[1]{0}', space=sflag, size = 0x4, scoped, tag = 'scoped memory for tpu_custom_call.1']
    #allocation5 [shape = 'u8[8192]{0}', space=vmem, size = 0x2000, scoped, tag = 'input window, operand 1, single buffered']
    #allocation6 [shape = 's32[1]{0}', space=sflag, size = 0x4, scoped, tag = 'scoped memory for tpu_custom_call.1']
    #allocation7 [shape = 'u8[512]{0}', space=vmem, size = 0x400, scoped, tag = 'output window, operand 0, single buffered']
    %7 = vsyncpa [#allocation3], 0
    %8 = vsyncpa [#allocation6], 0
    %9 = vsyncpa [#allocation4], 0
    // Predicated region
    $region2: #{tpu_custom_call.1} parent=1 // pred_check
      _
    $region3: #{tpu_custom_call.1} parent=1 // pred_check_branch
      %11 = sbr.rel (0) target = $region5
    $region4: #{tpu_custom_call.1} parent=1 // pred_region
      %s13 = ssub.s32 256, 256
      %14 = vsyncadd [#allocation3], %s13
      %s15 = sshll.u32 [#allocation2], 4
      %s16 = int_to_ptr.vmem [resolvable:$true] %s15
      %21 = dma.hbm_to_vmem [thread:$0]  %s0, 256, %s16, [#allocation3], 128, 128, 8
    $region5: #{tpu_custom_call.1} parent=1 // pred_fallthru
      _
    // Predicated region
    $region6: #{tpu_custom_call.1} parent=1 // pred_check
      _
    $region7: #{tpu_custom_call.1} parent=1 // pred_check_branch
      %23 = sbr.rel (0) target = $region9
    $region8: #{tpu_custom_call.1} parent=1 // pred_region
      %s25 = ssub.s32 256, 256
      %26 = vsyncadd [#allocation6], %s25
      %s27 = sshll.u32 [#allocation5], 4
      %s28 = int_to_ptr.vmem [resolvable:$true] %s27
      %33 = dma.hbm_to_vmem [thread:$0]  %s1, 256, %s28, [#allocation6], 128, 128, 8
    $region9: #{tpu_custom_call.1} parent=1 // pred_fallthru
      _
    // Predicated region
    $region10: #{tpu_custom_call.1} parent=1 // pred_check
      _
    $region11: #{tpu_custom_call.1} parent=1 // pred_check_branch
      %35 = sbr.rel (0) target = $region13
    $region12: #{tpu_custom_call.1} parent=1 // pred_region
      %36 = dma.done [#allocation3], 256
    $region13: #{tpu_custom_call.1} parent=1 // pred_fallthru
      _
    // Predicated region
    $region14: #{tpu_custom_call.1} parent=1 // pred_check
      _
    $region15: #{tpu_custom_call.1} parent=1 // pred_check_branch
      %38 = sbr.rel (0) target = $region17
    $region16: #{tpu_custom_call.1} parent=1 // pred_region
      %39 = dma.done [#allocation6], 256
    $region17: #{tpu_custom_call.1} parent=1 // pred_fallthru
      _
    %v40 = vld [vmem:[#allocation2] sm:$0xff]
    %v41 = vld [vmem:[#allocation2 + $0x8] sm:$0xff]
    %v42 = vld [vmem:[#allocation5] sm:$0xff]
    %v43 = vld [vmem:[#allocation5 + $0x8] sm:$0xff]
    %v44 = vsub.f32 %v40, %v42
    %v45 = vsub.f32 %v41, %v43
    %v46 = vmul.f32 %v44, %v44
    %v47 = vmul.f32 %v45, %v45
    %v48 = vadd.f32 %v46, %v47
    %v49 = vrot.slane %v48, 4
    %v50 = vadd.f32 %v48, %v49
    %v51 = vrot.slane %v50, 2
    %v52 = vadd.f32 %v50, %v51
    %v53 = vrot.slane %v52, 1
    %v54 = vadd.f32 %v52, %v53
    %55 = vst [vmem:[#allocation7] sm:$0x1] %v54
    // Predicated region
    $region18: #{tpu_custom_call.1} parent=1 // pred_check
      _
    $region19: #{tpu_custom_call.1} parent=1 // pred_check_branch
      %57 = sbr.rel (0) target = $region21
    $region20: #{tpu_custom_call.1} parent=1 // pred_region
      %s59 = ssub.s32 16, 16
      %60 = vsyncadd [#allocation4], %s59
      %s62 = sshll.u32 [#allocation7], 4
      %s63 = int_to_ptr.vmem [resolvable:$true] %s62
      %65 = dma.vmem_to_hbm [thread:$0]  %s63, 16, %s2, [#allocation4]
    $region21: #{tpu_custom_call.1} parent=1 // pred_fallthru
      _
    // Predicated region
    $region22: #{tpu_custom_call.1} parent=1 // pred_check
      _
    $region23: #{tpu_custom_call.1} parent=1 // pred_check_branch
      %67 = sbr.rel (0) target = $region25
    $region24: #{tpu_custom_call.1} parent=1 // pred_region
      %68 = dma.done [#allocation4], 16
    $region25: #{tpu_custom_call.1} parent=1 // pred_fallthru
      _
    %69 = vsyncpa [#allocation3], 1
    %70 = vsyncpa [#allocation6], 1
    %71 = vsyncpa [#allocation4], 1

</llo_original>
